<compile_context>
chip_gen: v5e
topology: v5e:2x2
jax: 0.10.0
libtpu: 0.0.40
codegen_flags: <defaults>
</compile_context>

<pallas_src>
import functools

import jax
import jax.numpy as jnp
from jax.experimental import pallas as pl
from jax.experimental.pallas import tpu as pltpu

EPS = 1e-5


# --------------------------------------------------------------------------- tuning helpers
def _vmem_limit_bytes():
    """~3/4 of this generation's physical VMEM (≈48 MiB v7x, ≈96 MiB v5e/v6e)."""
    cap = None
    try:
        cap = getattr(pltpu.get_tpu_info(), "vmem_capacity_bytes", None)
    except Exception:
        cap = None
    if not cap:
        cap = 64 * 1024 * 1024  # conservative default: v7x physical per-TC VMEM
    return max(32 * 1024 * 1024, (int(cap) * 3) // 4)


def _tile_budget_bytes(vmem_limit, itemsize):
    """Per-step x-tile budget.

    Per grid step the footprint is roughly: x tile (double-buffered) + out tile
    (double-buffered) + ~2 full-tile f32 temporaries inside the kernel (the single
    f32 cast of x and the FMA result before the down-cast).
    """
    f32_blowup = max(1, 4 // max(1, itemsize))
    divisor = 4 + 2 * f32_blowup          # f32 input: ~6 tiles, bf16 input: ~8 tiles
    return max(1 * 1024 * 1024, vmem_limit // divisor)


def _plan(N, C, HW, itemsize, tile_budget):
    """Pick ('fused', tc, None) or ('two_phase', tc, thw).

    tc is always a multiple of 8 or equal to C (sublane rule); thw is a multiple of 128
    (lane rule).  Ragged last channel tiles are fine: stats of padded sublanes are garbage
    but their writeback is masked; ragged HW tiles are masked explicitly in the stats kernel.
    """
    per_channel = max(1, N * HW * itemsize)
    tc_max = tile_budget // per_channel

    if tc_max < 8:
        # Even an 8-channel tile overflows the per-step budget.
        if C <= 8:
            return ("fused", C, None)          # tc == C is legal; budget has ~6x headroom
        if HW > 128:
            raw = (tile_budget // (N * 8 * itemsize)) // 128 * 128
            thw = max(128, min(raw, (HW // 128) * 128))
            return ("two_phase", 8, thw)
        return ("fused", 8, None)              # HW tiny; 8 channels is the legal minimum

    tc_fit = (tc_max // 8) * 8
    if tc_fit >= C:
        # Whole channel dim fits in one step.  Split into >= 2 steps when possible so
        # dimension_semantics=("parallel",) uses both v7x TensorCores (costs one extra
        # ~0.35us grid step on single-TC v5e/v6e — negligible).
        if C >= 16:
            half = -(-C // 2)
            tc = 0
            for t in range(8, half + 1, 8):    # prefer a multiple-of-8 divisor of C
                if C % t == 0:
                    tc = t
            if tc == 0:
                tc = max(8, (half // 8) * 8)
            return ("fused", tc, None)
        return ("fused", C, None)
    return ("fused", tc_fit, None)


# --------------------------------------------------------------------------------- kernels
def _stats_from_sums(s1, s2, inv_denom):
    """Per-channel mean / inv_std from sum and sum-of-squares (biased var, eps=1e-5)."""
    mean = s1 * inv_denom
    var = jnp.maximum(s2 * inv_denom - mean * mean, 0.0)   # clamp fp cancellation noise
    inv_std = jax.lax.rsqrt(var + EPS)
    return mean, inv_std                                   # both (tc, 1) f32


def _apply_affine(xf, gb, mean_c, inv_std_c, out_dtype):
    """Fold BN normalize + conditional affine into one per-element FMA.

    xf: (N, tc, hw) f32;  gb: (2, tc, N) gamma/beta channel-major;
    mean_c, inv_std_c: (tc, 1) f32.
    """
    gbf = gb.astype(jnp.float32)
    scale_cn = gbf[0] * inv_std_c                    # (tc, N)
    shift_cn = gbf[1] - scale_cn * mean_c            # (tc, N)
    scale = jnp.transpose(scale_cn)[:, :, None]      # (N, tc, 1) — cheap XLU transpose
    shift = jnp.transpose(shift_cn)[:, :, None]
    return (xf * scale + shift).astype(out_dtype)


def _ccbn_fused_kernel(x_ref, gb_ref, o_ref, *, inv_denom):
    # Single pass: the full (N, HW) extent of a channel tile is resident, so stats and
    # the normalize FMA happen in one sweep.
    xf = x_ref[...].astype(jnp.float32)                     # cast once, reuse 3x
    s1 = jnp.sum(xf, axis=(0, 2), keepdims=True)[0]         # (tc, 1), f32 accumulation
    s2 = jnp.sum(xf * xf, axis=(0, 2), keepdims=True)[0]    # (tc, 1)
    mean_c, inv_std_c = _stats_from_sums(s1, s2, inv_denom)
    o_ref[...] = _apply_affine(xf, gb_ref[...], mean_c, inv_std_c, o_ref.dtype)


def _ccbn_stats_kernel(x_ref, s1_ref, s2_ref, *, hw_total, thw):
    # Phase 1 of the large-activation path: accumulate per-channel sum / sum-of-squares
    # over HW chunks into resident (tc, 1) output blocks.
    hw_idx = pl.program_id(1)

    @pl.when(hw_idx == 0)
    def _():
        s1_ref[...] = jnp.zeros_like(s1_ref)
        s2_ref[...] = jnp.zeros_like(s2_ref)

    xf = x_ref[...].astype(jnp.float32)                     # (N, tc, thw)
    if hw_total % thw != 0:
        # Ragged last HW tile: padded lanes hold unspecified VMEM, zero them before summing.
        col = jax.lax.broadcasted_iota(jnp.int32, xf.shape, dimension=2)
        xf = jnp.where(hw_idx * thw + col < hw_total, xf, 0.0)

    s1_ref[...] += jnp.sum(xf, axis=(0, 2), keepdims=True)[0]
    s2_ref[...] += jnp.sum(xf * xf, axis=(0, 2), keepdims=True)[0]


def _ccbn_norm_kernel(x_ref, gb_ref, s1_ref, s2_ref, o_ref, *, inv_denom):
    # Phase 2: fully parallel normalize + conditional affine (one FMA per element).
    xf = x_ref[...].astype(jnp.float32)
    mean_c, inv_std_c = _stats_from_sums(s1_ref[...], s2_ref[...], inv_denom)
    o_ref[...] = _apply_affine(xf, gb_ref[...], mean_c, inv_std_c, o_ref.dtype)


# --------------------------------------------------------------------------------- wrapper
def categorical_conditional_batchnorm2d(x, y, embed_weight, num_features):
    """x: (N, C, H, W) float; y: (N,) int class ids; embed_weight: (num_classes, 2*C)."""
    N, C, H, W = x.shape
    assert C == num_features
    HW = H * W

    # Embedding lookup + chunk: tiny parameter gather, stays in plain JAX glue.
    gb = embed_weight[y]                                   # (N, 2C)
    gamma = gb[:, :num_features]                           # (N, C)
    beta = gb[:, num_features:]                            # (N, C)
    # Pack channel-major with N on the lane axis: the per-step (2, tc, N) block is tiny
    # (no (N, tc, 1) lane padding to 128) and needs a single DMA per grid step.
    gb_packed = jnp.stack([gamma.T, beta.T], axis=0)       # (2, C, N)

    x3 = x.reshape(N, C, HW)
    itemsize = x.dtype.itemsize
    vmem_limit = _vmem_limit_bytes()
    tile_budget = _tile_budget_bytes(vmem_limit, itemsize)
    mode, tc, thw = _plan(N, C, HW, itemsize, tile_budget)
    inv_denom = 1.0 / float(N * HW)      # from the logical shape, never the block shape

    if mode == "fused":
        out = pl.pallas_call(
            functools.partial(_ccbn_fused_kernel, inv_denom=inv_denom),
            out_shape=jax.ShapeDtypeStruct((N, C, HW), x.dtype),
            grid=(pl.cdiv(C, tc),),
            in_specs=[
                # TODO(synk): sweep pipeline_mode=pl.Buffered(3) on x once profiled; only
                # worth keeping if the prefetch/writeback seam shows DMA idle gaps.
                pl.BlockSpec((N, tc, HW), lambda c: (0, c, 0)),
                pl.BlockSpec((2, tc, N), lambda c: (0, c, 0)),
            ],
            out_specs=pl.BlockSpec((N, tc, HW), lambda c: (0, c, 0)),
            compiler_params=pltpu.CompilerParams(
                dimension_semantics=("parallel",),
                vmem_limit_bytes=vmem_limit,
            ),
        )(x3, gb_packed)
    else:
        # Two-phase path for activations where even an 8-channel tile overflows the budget:
        # (1) HW-chunked stats accumulation, (2) parallel normalize pass.  x is read twice
        # from HBM, which is unavoidable for batch-norm at this size.
        grid = (pl.cdiv(C, tc), pl.cdiv(HW, thw))
        s1, s2 = pl.pallas_call(
            functools.partial(_ccbn_stats_kernel, hw_total=HW, thw=thw),
            out_shape=(
                jax.ShapeDtypeStruct((C, 1), jnp.float32),
                jax.ShapeDtypeStruct((C, 1), jnp.float32),
            ),
            grid=grid,
            in_specs=[pl.BlockSpec((N, tc, thw), lambda c, h: (0, c, h))],
            out_specs=(
                pl.BlockSpec((tc, 1), lambda c, h: (c, 0)),
                pl.BlockSpec((tc, 1), lambda c, h: (c, 0)),
            ),
            compiler_params=pltpu.CompilerParams(
                dimension_semantics=("parallel", "arbitrary"),
                vmem_limit_bytes=vmem_limit,
            ),
        )(x3)
        out = pl.pallas_call(
            functools.partial(_ccbn_norm_kernel, inv_denom=inv_denom),
            out_shape=jax.ShapeDtypeStruct((N, C, HW), x.dtype),
            grid=grid,
            in_specs=[
                pl.BlockSpec((N, tc, thw), lambda c, h: (0, c, h)),
                pl.BlockSpec((2, tc, N), lambda c, h: (0, c, 0)),
                pl.BlockSpec((tc, 1), lambda c, h: (c, 0)),
                pl.BlockSpec((tc, 1), lambda c, h: (c, 0)),
            ],
            out_specs=pl.BlockSpec((N, tc, thw), lambda c, h: (0, c, h)),
            compiler_params=pltpu.CompilerParams(
                dimension_semantics=("parallel", "parallel"),
                vmem_limit_bytes=vmem_limit,
            ),
        )(x3, gb_packed, s1, s2)

    return out.reshape(N, C, H, W)


def _reference(x, y, embed_weight, num_features):
    """Pure-JAX reference matching the PyTorch forward (training-mode BN, affine=False)."""
    gb = embed_weight[y]
    gamma = gb[:, :num_features][:, :, None, None]
    beta = gb[:, num_features:][:, :, None, None]
    mean = jnp.mean(x, axis=(0, 2, 3), keepdims=True)
    var = jnp.mean((x - mean) ** 2, axis=(0, 2, 3), keepdims=True)
    xn = (x - mean) / jnp.sqrt(var + EPS)
    return gamma * xn + beta


if __name__ == "__main__":
    num_features = 4
    num_classes = 10
    N, C, H, W = 2, num_features, 16, 16

    key = jax.random.PRNGKey(0)
    kx, ky, kw = jax.random.split(key, 3)

    x = jax.random.normal(kx, (N, C, H, W), dtype=jnp.float32)
    y = jax.random.randint(ky, (N,), 0, num_classes, dtype=jnp.int32)

    # Deterministic parameter init mirroring the module's __init__:
    #   embed.weight[:, :num_features] ~ Normal(1, 0.02);  embed.weight[:, num_features:] = 0
    gamma_part = 1.0 + 0.02 * jax.random.normal(kw, (num_classes, num_features), dtype=jnp.float32)
    beta_part = jnp.zeros((num_classes, num_features), dtype=jnp.float32)
    embed_weight = jnp.concatenate([gamma_part, beta_part], axis=1)     # (num_classes, 2C)

    out = categorical_conditional_batchnorm2d(x, y, embed_weight, num_features)
    out = jax.block_until_ready(out)

    ref = _reference(x, y, embed_weight, num_features)
    assert out.shape == (N, C, H, W)
    assert jnp.allclose(out, ref, atol=1e-4, rtol=1e-5), "mismatch vs reference"

    print("KERNEL_OK")
</pallas_src>

<mosaic_0001>
module attributes {stable_mosaic.version = 11 : i64} {
  func.func @_ccbn_fused_kernel(%arg0: i32, %arg1: memref<2x4x256xf32, #tpu.memory_space<vmem>>, %arg2: memref<2x4x2xf32, #tpu.memory_space<vmem>>, %arg3: memref<2x4x256xf32, #tpu.memory_space<vmem>>) attributes {dimension_semantics = [#tpu.dimension_semantics<parallel>], iteration_bounds = array<i64: 1>, scalar_prefetch = 0 : i64, scratch_operands = 0 : i64, tpu.core_type = #tpu.core_type<tc>, window_params = [{transform_indices = @transform_0, window_bounds = array<i64: 2, 4, 256>}, {transform_indices = @transform_1, window_bounds = array<i64: 2, 4, 2>}, {transform_indices = @transform_2, window_bounds = array<i64: 2, 4, 256>}]} {
    %c0 = arith.constant 0 : index
    %c0_0 = arith.constant 0 : index
    %c0_1 = arith.constant 0 : index
    %0 = vector.load %arg1[%c0, %c0_0, %c0_1] : memref<2x4x256xf32, #tpu.memory_space<vmem>>, vector<2x4x256xf32>
    %cst = arith.constant dense<0.000000e+00> : vector<4xf32>
    %1 = vector.multi_reduction <add>, %0, %cst [0, 2] : vector<2x4x256xf32> to vector<4xf32>
    %2 = vector.shape_cast %1 : vector<4xf32> to vector<1x4x1xf32>
    %3 = vector.shape_cast %2 : vector<1x4x1xf32> to vector<4x1xf32>
    %4 = arith.mulf %0, %0 : vector<2x4x256xf32>
    %cst_2 = arith.constant dense<0.000000e+00> : vector<4xf32>
    %5 = vector.multi_reduction <add>, %4, %cst_2 [0, 2] : vector<2x4x256xf32> to vector<4xf32>
    %6 = vector.shape_cast %5 : vector<4xf32> to vector<1x4x1xf32>
    %7 = vector.shape_cast %6 : vector<1x4x1xf32> to vector<4x1xf32>
    %cst_3 = arith.constant 0.001953125 : f32
    %8 = vector.broadcast %cst_3 : f32 to vector<4x1xf32>
    %9 = arith.mulf %3, %8 : vector<4x1xf32>
    %cst_4 = arith.constant 0.001953125 : f32
    %10 = vector.broadcast %cst_4 : f32 to vector<4x1xf32>
    %11 = arith.mulf %7, %10 : vector<4x1xf32>
    %12 = arith.mulf %9, %9 : vector<4x1xf32>
    %13 = arith.subf %11, %12 : vector<4x1xf32>
    %cst_5 = arith.constant 0.000000e+00 : f32
    %14 = vector.broadcast %cst_5 : f32 to vector<4x1xf32>
    %15 = arith.maximumf %13, %14 : vector<4x1xf32>
    %cst_6 = arith.constant 9.99999974E-6 : f32
    %16 = vector.broadcast %cst_6 : f32 to vector<4x1xf32>
    %17 = arith.addf %15, %16 : vector<4x1xf32>
    %18 = math.rsqrt %17 : vector<4x1xf32>
    %c0_7 = arith.constant 0 : index
    %c0_8 = arith.constant 0 : index
    %c0_9 = arith.constant 0 : index
    %19 = vector.load %arg2[%c0_7, %c0_8, %c0_9] : memref<2x4x2xf32, #tpu.memory_space<vmem>>, vector<2x4x2xf32>
    %20 = vector.extract_strided_slice %19 {offsets = [0, 0, 0], sizes = [1, 4, 2], strides = [1, 1, 1]} : vector<2x4x2xf32> to vector<1x4x2xf32>
    %21 = vector.shape_cast %20 : vector<1x4x2xf32> to vector<4x2xf32>
    %22 = vector.broadcast %18 : vector<4x1xf32> to vector<4x2xf32>
    %23 = arith.mulf %21, %22 : vector<4x2xf32>
    %24 = vector.extract_strided_slice %19 {offsets = [1, 0, 0], sizes = [1, 4, 2], strides = [1, 1, 1]} : vector<2x4x2xf32> to vector<1x4x2xf32>
    %25 = vector.shape_cast %24 : vector<1x4x2xf32> to vector<4x2xf32>
    %26 = vector.broadcast %9 : vector<4x1xf32> to vector<4x2xf32>
    %27 = arith.mulf %23, %26 : vector<4x2xf32>
    %28 = arith.subf %25, %27 : vector<4x2xf32>
    %29 = tpu.transpose %23, [1, 0] : vector<4x2xf32> -> vector<2x4xf32>
    %30 = vector.shape_cast %29 : vector<2x4xf32> to vector<2x4x1xf32>
    %31 = tpu.transpose %28, [1, 0] : vector<4x2xf32> -> vector<2x4xf32>
    %32 = vector.shape_cast %31 : vector<2x4xf32> to vector<2x4x1xf32>
    %33 = vector.broadcast %30 : vector<2x4x1xf32> to vector<2x4x256xf32>
    %34 = arith.mulf %0, %33 : vector<2x4x256xf32>
    %35 = vector.broadcast %32 : vector<2x4x1xf32> to vector<2x4x256xf32>
    %36 = arith.addf %34, %35 : vector<2x4x256xf32>
    %c0_10 = arith.constant 0 : index
    %c0_11 = arith.constant 0 : index
    %c0_12 = arith.constant 0 : index
    %37 = vector.load %arg3[%c0_10, %c0_11, %c0_12] : memref<2x4x256xf32, #tpu.memory_space<vmem>>, vector<2x4x256xf32>
    tpu.vector_store %arg3[%c0_10, %c0_11, %c0_12], %36 {strides = array<i32>} : memref<2x4x256xf32, #tpu.memory_space<vmem>>, vector<2x4x256xf32>,
    return
  }
  func.func @transform_0(%arg0: i32) -> (i32, i32, i32) {
    %c0_i32 = arith.constant 0 : i32
    %c0_i32_0 = arith.constant 0 : i32
    %c0_i32_1 = arith.constant 0 : i32
    return %c0_i32, %arg0, %c0_i32_0 : i32, i32, i32
  }
  func.func @transform_1(%arg0: i32) -> (i32, i32, i32) {
    %c0_i32 = arith.constant 0 : i32
    %c0_i32_0 = arith.constant 0 : i32
    %c0_i32_1 = arith.constant 0 : i32
    return %c0_i32, %arg0, %c0_i32_0 : i32, i32, i32
  }
  func.func @transform_2(%arg0: i32) -> (i32, i32, i32) {
    %c0_i32 = arith.constant 0 : i32
    %c0_i32_0 = arith.constant 0 : i32
    %c0_i32_1 = arith.constant 0 : i32
    return %c0_i32, %arg0, %c0_i32_0 : i32, i32, i32
  }
}

</mosaic_0001>

<llo_original>
// kernel: tpu_custom_call.1
$region0: #{tpu_custom_call.1}
  #allocation0 [shape = 'u32[]', space=smem, size = 0x4, offset = 0x4, fixed_abs, tag = 'smem constant byte address 0x4 - core index']
  #allocation1 [shape = 'u32[72,128]{1,0:T(1,128)}', space=vmem, size = 0x9000, scoped, tag = 'internal scratch']
  %s0 = inlined_call_operand.hbm [shape: f32[2,4,256], index: 0, kind: input, shape index: {}]
  %s1 = inlined_call_operand.vmem [shape: f32[2,4,2], index: 1, kind: input, shape index: {}]
  %s2 = inlined_call_operand.hbm [shape: f32[2,4,256], index: 2, kind: output, shape index: {}]
  %s3 = sld [smem:[#allocation0]]
  $region22: #{tpu_custom_call.1} parent=0
    _
  %s5 = ssub.s32 1, %s3
  %s6 = scalar_select 0, %s5, %s3
  $region1: #{tpu_custom_call.1} parent=0
    #allocation2 [shape = 'u8[8192]{0}', space=vmem, size = 0x2000, scoped, tag = 'input window, operand 0, single buffered']
    #allocation3 [shape = 's32[1]{0}', space=sflag, size = 0x4, scoped, tag = 'scoped memory for tpu_custom_call.1']
    #allocation4 [shape = 's32[1]{0}', space=sflag, size = 0x4, scoped, tag = 'scoped memory for tpu_custom_call.1']
    #allocation5 [shape = 'u8[8192]{0}', space=vmem, size = 0x2000, scoped, tag = 'output window, operand 0, single buffered']
    %7 = vsyncpa [#allocation3], 0
    %8 = vsyncpa [#allocation4], 0
    // Predicated region
    $region2: #{tpu_custom_call.1} parent=1 // pred_check
      _
    $region3: #{tpu_custom_call.1} parent=1 // pred_check_branch
      %10 = sbr.rel (0) target = $region5
    $region4: #{tpu_custom_call.1} parent=1 // pred_region
      %12 = vsyncadd [#allocation3], 0
      %s13 = sshll.u32 %s0, 4
      %s14 = int_to_ptr.hbm [resolvable:$true] %s13
      %s15 = sshll.u32 [#allocation2], 4
      %s16 = int_to_ptr.vmem [resolvable:$true] %s15
      %21 = dma.hbm_to_vmem [thread:$0]  %s14, 256, %s16, [#allocation3], 128, 128, 8
    $region5: #{tpu_custom_call.1} parent=1 // pred_fallthru
      _
    // Predicated region
    $region6: #{tpu_custom_call.1} parent=1 // pred_check
      _
    $region7: #{tpu_custom_call.1} parent=1 // pred_check_branch
      %23 = sbr.rel (0) target = $region9
    $region8: #{tpu_custom_call.1} parent=1 // pred_region
      _
    $region9: #{tpu_custom_call.1} parent=1 // pred_fallthru
      _
    // Predicated region
    $region10: #{tpu_custom_call.1} parent=1 // pred_check
      _
    $region11: #{tpu_custom_call.1} parent=1 // pred_check_branch
      %25 = sbr.rel (0) target = $region13
    $region12: #{tpu_custom_call.1} parent=1 // pred_region
      %27 = dma.done [#allocation3], 256
    $region13: #{tpu_custom_call.1} parent=1 // pred_fallthru
      _
    %v28 = vld [vmem:[#allocation2] sm:$0xff]
    %v29 = vld [vmem:[#allocation2 + $0x8] sm:$0xff]
    %32 = vst [vmem:[#allocation1] ss:$2 sm:$0xff] %v28
    %v33 = vld.sshfl [vmem:[#allocation1] sm:$0xff pattern:$0x75316420]
    %v34 = vld.sshfl [vmem:[#allocation1 + $0x8] sm:$0xff pattern:$0x75316420]
    %s35 = scalar_lea.vmem [#allocation1], 16
    %36 = vst [vmem:[%s35] ss:$2 sm:$0xff] %v29
    %v37 = vld.sshfl [vmem:[#allocation1 + $0x10] sm:$0xff pattern:$0x75316420]
    %v38 = vld.sshfl [vmem:[#allocation1 + $0x18] sm:$0xff pattern:$0x75316420]
    %vm43 = vcmask 1043456
    %v44 = vsel %vm43, %v33, 0.0
    %v45 = vsel %vm43, %v34, 0.0
    %v46 = vadd.f32 %v44, %v45
    %v47 = vsel %vm43, %v37, 0.0
    %v48 = vadd.f32 %v46, %v47
    %v49 = vsel %vm43, %v38, 0.0
    %v50 = vadd.f32 %v48, %v49
    %51 = vadd.xlane.f32.xlu0 %v50
    %v52 = vpop.xlane.xlu0 %51
    %v53 = vmul.f32 %v28, %v28
    %v54 = vmul.f32 %v29, %v29
    %57 = vst [vmem:[#allocation1] ss:$2 sm:$0xff] %v53
    %v58 = vld.sshfl [vmem:[#allocation1] sm:$0xff pattern:$0x75316420]
    %v59 = vld.sshfl [vmem:[#allocation1 + $0x8] sm:$0xff pattern:$0x75316420]
    %s60 = scalar_lea.vmem [#allocation1], 16
    %61 = vst [vmem:[%s60] ss:$2 sm:$0xff] %v54
    %v62 = vld.sshfl [vmem:[#allocation1 + $0x10] sm:$0xff pattern:$0x75316420]
    %v63 = vld.sshfl [vmem:[#allocation1 + $0x18] sm:$0xff pattern:$0x75316420]
    %v68 = vsel %vm43, %v58, 0.0
    %v69 = vsel %vm43, %v59, 0.0
    %v70 = vadd.f32 %v68, %v69
    %v71 = vsel %vm43, %v62, 0.0
    %v72 = vadd.f32 %v70, %v71
    %v73 = vsel %vm43, %v63, 0.0
    %v74 = vadd.f32 %v72, %v73
    %75 = vadd.xlane.f32.xlu0 %v74
    %v76 = vpop.xlane.xlu0 %75
    %v77 = vmul.f32 %v52, 0.001953125
    %v78 = vmul.f32 %v76, 0.001953125
    %v79 = vmul.f32 %v77, %v77
    %v80 = vsub.f32 %v78, %v79
    %v81 = vmax.f32 %v80, 0.0
    %v82 = vadd.f32 %v81, 1e-05
    %v83 = vrsqrt.pop %v82
    %v84 = vmul.f32 %v83, %v82
    %v85 = vmul.f32 %v84, %v83
    %v86 = vmul.f32 0.5, %v85
    %v87 = vsub.f32 1.5, %v86
    %v88 = vmul.f32 %v83, %v87
    %vm89 = vweird.f32 %v82
    %vm90 = vweird.f32 %v83
    %vm91 = vmor %vm89, %vm90
    %v92 = vsel %vm91, %v83, %v88
    %v93 = vld [vmem:[%s1] sm:$0xf]
    %v94 = vld [vmem:[%s1 + $0x4] sm:$0xf]
    %v95 = vmul.f32 %v93, %v92
    %v96 = vmul.f32 %v95, %v77
    %v97 = vsub.f32 %v94, %v96
    %98 = vxpose.xlu0.b32.start [1/16] %v95, 128
    %99 = vxpose.xlu0.b32.cont [2/16] 0.0, 128
    %100 = vxpose.xlu0.b32.cont [3/16] 0.0, 128
    %101 = vxpose.xlu0.b32.cont [4/16] 0.0, 128
    %102 = vxpose.xlu0.b32.cont [5/16] 0.0, 128
    %103 = vxpose.xlu0.b32.cont [6/16] 0.0, 128
    %104 = vxpose.xlu0.b32.cont [7/16] 0.0, 128
    %105 = vxpose.xlu0.b32.cont [8/16] 0.0, 128
    %106 = vxpose.xlu0.b32.cont [9/16] 0.0, 128
    %107 = vxpose.xlu0.b32.cont [10/16] 0.0, 128
    %108 = vxpose.xlu0.b32.cont [11/16] 0.0, 128
    %109 = vxpose.xlu0.b32.cont [12/16] 0.0, 128
    %110 = vxpose.xlu0.b32.cont [13/16] 0.0, 128
    %111 = vxpose.xlu0.b32.cont [14/16] 0.0, 128
    %112 = vxpose.xlu0.b32.cont [15/16] 0.0, 128
    %113 = vxpose.xlu0.b32.end [16/16] 0.0, 128
    %v114 = vpop.trf.xlu0
    %v115 = vpop.trf.xlu0
    %v116 = vpop.trf.xlu0
    %v117 = vpop.trf.xlu0
    %v118 = vpop.trf.xlu0
    %v119 = vpop.trf.xlu0
    %v120 = vpop.trf.xlu0
    %v121 = vpop.trf.xlu0
    %v122 = vpop.trf.xlu0
    %v123 = vpop.trf.xlu0
    %v124 = vpop.trf.xlu0
    %v125 = vpop.trf.xlu0
    %v126 = vpop.trf.xlu0
    %v127 = vpop.trf.xlu0
    %v128 = vpop.trf.xlu0
    %v129 = vpop.trf.xlu0
    %v130 = vperm.slane %v114, 0
    %v131 = vlaneseq
    %v132 = vshrl.u32 %v131, 7
    %134 = vset.pattern.permute.xlu0 %v132
    %135 = vperm.xlu0 %134, %v130
    %v136 = vpop.permute.xlu0 %135
    %v137 = vperm.slane %v114, 1
    %v138 = vlaneseq
    %v139 = vshrl.u32 %v138, 7
    %141 = vset.pattern.permute.xlu0 %v139
    %142 = vperm.xlu0 %141, %v137
    %v143 = vpop.permute.xlu0 %142
    %144 = vxpose.xlu0.b32.start [1/16] %v97, 128
    %145 = vxpose.xlu0.b32.cont [2/16] 0.0, 128
    %146 = vxpose.xlu0.b32.cont [3/16] 0.0, 128
    %147 = vxpose.xlu0.b32.cont [4/16] 0.0, 128
    %148 = vxpose.xlu0.b32.cont [5/16] 0.0, 128
    %149 = vxpose.xlu0.b32.cont [6/16] 0.0, 128
    %150 = vxpose.xlu0.b32.cont [7/16] 0.0, 128
    %151 = vxpose.xlu0.b32.cont [8/16] 0.0, 128
    %152 = vxpose.xlu0.b32.cont [9/16] 0.0, 128
    %153 = vxpose.xlu0.b32.cont [10/16] 0.0, 128
    %154 = vxpose.xlu0.b32.cont [11/16] 0.0, 128
    %155 = vxpose.xlu0.b32.cont [12/16] 0.0, 128
    %156 = vxpose.xlu0.b32.cont [13/16] 0.0, 128
    %157 = vxpose.xlu0.b32.cont [14/16] 0.0, 128
    %158 = vxpose.xlu0.b32.cont [15/16] 0.0, 128
    %159 = vxpose.xlu0.b32.end [16/16] 0.0, 128
    %v160 = vpop.trf.xlu0
    %v161 = vpop.trf.xlu0
    %v162 = vpop.trf.xlu0
    %v163 = vpop.trf.xlu0
    %v164 = vpop.trf.xlu0
    %v165 = vpop.trf.xlu0
    %v166 = vpop.trf.xlu0
    %v167 = vpop.trf.xlu0
    %v168 = vpop.trf.xlu0
    %v169 = vpop.trf.xlu0
    %v170 = vpop.trf.xlu0
    %v171 = vpop.trf.xlu0
    %v172 = vpop.trf.xlu0
    %v173 = vpop.trf.xlu0
    %v174 = vpop.trf.xlu0
    %v175 = vpop.trf.xlu0
    %v176 = vperm.slane %v160, 0
    %v177 = vlaneseq
    %v178 = vshrl.u32 %v177, 7
    %180 = vset.pattern.permute.xlu0 %v178
    %181 = vperm.xlu0 %180, %v176
    %v182 = vpop.permute.xlu0 %181
    %v183 = vperm.slane %v160, 1
    %v184 = vlaneseq
    %v185 = vshrl.u32 %v184, 7
    %187 = vset.pattern.permute.xlu0 %v185
    %188 = vperm.xlu0 %187, %v183
    %v189 = vpop.permute.xlu0 %188
    %v193 = vunpack.c.l.s4 839922192
    %v194 = vunpack.c.0.s8 %v193
    %v195 = vperm.slane %v136, %v194
    %v197 = vunpack.c.l.s4 839922192
    %v198 = vunpack.c.0.s8 %v197
    %v199 = vperm.slane %v143, %v198
    %v202 = vmul.f32 %v28, %v195
    %v203 = vmul.f32 %v29, %v199
    %v207 = vunpack.c.l.s4 839922192
    %v208 = vunpack.c.0.s8 %v207
    %v209 = vperm.slane %v182, %v208
    %v211 = vunpack.c.l.s4 839922192
    %v212 = vunpack.c.0.s8 %v211
    %v213 = vperm.slane %v189, %v212
    %v216 = vadd.f32 %v202, %v209
    %v217 = vadd.f32 %v203, %v213
    %218 = vst [vmem:[#allocation5] sm:$0xff] %v216
    %219 = vst [vmem:[#allocation5 + $0x8] sm:$0xff] %v217
    // Predicated region
    $region14: #{tpu_custom_call.1} parent=1 // pred_check
      _
    $region15: #{tpu_custom_call.1} parent=1 // pred_check_branch
      %221 = sbr.rel (0) target = $region17
    $region16: #{tpu_custom_call.1} parent=1 // pred_region
      %223 = vsyncadd [#allocation4], 0
      %s224 = sshll.u32 [#allocation5], 4
      %s225 = int_to_ptr.vmem [resolvable:$true] %s224
      %s226 = sshll.u32 %s2, 4
      %s227 = int_to_ptr.hbm [resolvable:$true] %s226
      %232 = dma.vmem_to_hbm [thread:$0]  %s225, 256, %s227, [#allocation4], 128, 128, 8
    $region17: #{tpu_custom_call.1} parent=1 // pred_fallthru
      _
    // Predicated region
    $region18: #{tpu_custom_call.1} parent=1 // pred_check
      _
    $region19: #{tpu_custom_call.1} parent=1 // pred_check_branch
      %234 = sbr.rel (0) target = $region21
    $region20: #{tpu_custom_call.1} parent=1 // pred_region
      %236 = dma.done [#allocation4], 256
    $region21: #{tpu_custom_call.1} parent=1 // pred_fallthru
      _
    %237 = vsyncpa [#allocation3], 1
    %238 = vsyncpa [#allocation4], 1

</llo_original>
